<compile_context>
chip_gen: v6e
topology: v6e:2x2x1
jax: 0.10.0
libtpu: 0.0.40
codegen_flags: <defaults>
</compile_context>

<pallas_src>
import math

import jax
import jax.numpy as jnp
from jax.experimental import pallas as pl
from jax.experimental.pallas import tpu as pltpu


# ~4 MiB f32 tile (2 MiB bf16).  Double-buffered in + out ~= 16-17 MiB, which we
# make explicitly legal everywhere via vmem_limit_bytes (v5e's scoped default is
# only 16 MiB; physical VMEM is 128 MiB on v5e/v6e and 64 MiB on v7x).
_TILE_ROWS = 512          # multiple of 8 (sublanes)
_TILE_LANES = 2048        # multiple of 128 (lanes)
_VMEM_LIMIT_BYTES = 40 * 1024 * 1024
_FALLBACK_BYTES = 1 << 20  # below this, plain XLA add wins (launch overhead)


def _pick_tile(dim, target):
    """Full dim if it fits, else the aligned target (partial tail blocks OK)."""
    return dim if dim <= target else target


def _is_small(x):
    return x.size * jnp.dtype(x.dtype).itemsize < _FALLBACK_BYTES


def _pack_factor(n_rows, n_feat):
    """Fold k rows of an (N, F) array into the lane axis so stores are wide.

    Prefers k with (k*F) % 128 == 0 (unmasked full-width vector stores); falls
    back to the largest divisor of N that keeps stores reasonably wide.
    """
    if n_feat >= 128 or n_rows <= 1:
        return 1
    k0 = 128 // math.gcd(n_feat, 128)        # minimal k with k*F % 128 == 0
    if k0 <= n_rows and n_rows % k0 == 0:
        k = k0
        # Grow k (keeping k*F a multiple of 128) while the packed row still
        # fits one lane tile and we keep enough packed rows to tile sublanes.
        while (2 * k * n_feat) <= _TILE_LANES and n_rows % (2 * k) == 0 \
                and (n_rows // (2 * k)) >= 8:
            k *= 2
        return k
    # No multiple-of-128 packing divides N: take the widest divisor we can.
    best = 1
    for cand in range(min(n_rows, max(1, 1024 // n_feat)), 1, -1):
        if n_rows % cand == 0:
            if (cand * n_feat) % 128 == 0:
                return cand
            if best == 1:
                best = cand
    return best


# ------------------------------------------------------------------ kernel --
def _bias_add_kernel(x_ref, b_ref, o_ref):
    # x_ref: (TR, TL); b_ref: (1, TL) broadcast down the sublanes (cheap).
    o_ref[...] = (x_ref[...] + b_ref[...]).astype(o_ref.dtype)


# -------------------------------------------------------------- pallas_call --
def _call_row_bias(x, bias_row):
    """x: (R, L), bias_row: (1, L) broadcast down the rows."""
    R, L = x.shape
    TR = _pick_tile(R, _TILE_ROWS)
    TL = _pick_tile(L, _TILE_LANES)
    gr = pl.cdiv(R, TR)   # row blocks
    gl = pl.cdiv(L, TL)   # lane blocks

    if gl >= gr:
        # Lane axis leads (more blocks -> both v7x TCs busy); bias block index
        # is constant along the inner row axis -> bias tile stays resident.
        grid = (gl, gr)
        x_spec = pl.BlockSpec((TR, TL), lambda j, i: (i, j))
        b_spec = pl.BlockSpec((1, TL), lambda j, i: (0, j))
        o_spec = pl.BlockSpec((TR, TL), lambda j, i: (i, j))
    else:
        # Row axis leads (larger parallel axis first for megacore sharding).
        grid = (gr, gl)
        x_spec = pl.BlockSpec((TR, TL), lambda i, j: (i, j))
        b_spec = pl.BlockSpec((1, TL), lambda i, j: (0, j))
        o_spec = pl.BlockSpec((TR, TL), lambda i, j: (i, j))

    itemsize = jnp.dtype(x.dtype).itemsize
    cost = pl.CostEstimate(
        flops=R * L,
        transcendentals=0,
        bytes_accessed=(2 * R * L + L) * itemsize,
    )
    return pl.pallas_call(
        _bias_add_kernel,
        out_shape=jax.ShapeDtypeStruct((R, L), x.dtype),
        grid=grid,
        in_specs=[x_spec, b_spec],
        out_specs=o_spec,
        compiler_params=pltpu.CompilerParams(
            dimension_semantics=("parallel", "parallel"),
            vmem_limit_bytes=_VMEM_LIMIT_BYTES),
        cost_estimate=cost,
    )(x, bias_row)


# ------------------------------------------------------------------ wrapper --
class AddBiasesPallas:
    """JAX/Pallas port of the PyTorch AddBiases module."""

    def __init__(self, bias):
        b = jnp.asarray(bias).reshape(-1)
        # mirrors nn.Parameter(bias.unsqueeze(1)): bias (F,) -> (F, 1)
        self._bias = b.reshape(-1, 1)
        self._bias_vec = b
        self._num_feat = int(b.shape[0])
        # per-(dtype, shape-variant) cache of cast / tiled / repeated bias rows
        # (concrete arrays; safe to reuse across jit traces)
        self._cache = {}

    # ---- cached bias variants -------------------------------------------
    def _row_bias_2d(self, dtype, k):
        key = ("2d", jnp.dtype(dtype).str, int(k))
        if key not in self._cache:
            row = self._bias_vec.astype(dtype).reshape(1, -1)   # (1, F)
            if k > 1:
                row = jnp.tile(row, (1, k))                     # (1, k*F)
            self._cache[key] = row
        return self._cache[key]

    def _row_bias_4d(self, dtype, hw):
        key = ("4d", jnp.dtype(dtype).str, int(hw))
        if key not in self._cache:
            # channel-major repeat matches reshape(N, C*H*W) layout
            row = jnp.repeat(self._bias_vec.astype(dtype), hw).reshape(1, -1)
            self._cache[key] = row                              # (1, C*HW)
        return self._cache[key]

    # ---- forward ----------------------------------------------------------
    def __call__(self, x):
        if x.ndim == 2:
            return self._forward_2d(x)
        elif x.ndim == 4:
            return self._forward_4d(x)
        # TODO(synk): PyTorch's non-2D branch only broadcasts cleanly for 4-D
        # NCHW inputs; other ranks are rejected here as well.
        raise ValueError(f"unsupported input rank {x.ndim}")

    def _forward_2d(self, x):
        N, F = x.shape
        if _is_small(x):
            # Tiny inputs (the common case for this module): fused XLA add is
            # already at roofline; skip the pallas_call launch overhead.
            return x + self._row_bias_2d(x.dtype, 1)
        k = _pack_factor(N, F)
        brow = self._row_bias_2d(x.dtype, k)
        if k > 1:
            # (N, F) -> (N/k, k*F): contiguous glue reshape, lane-dense stores.
            out = _call_row_bias(x.reshape(N // k, k * F), brow)
            return out.reshape(N, F)
        return _call_row_bias(x, brow)

    def _forward_4d(self, x):
        N, C, H, W = x.shape
        if _is_small(x):
            return x + self._row_bias_2d(x.dtype, 1).reshape(1, C, 1, 1)
        hw = H * W
        brow = self._row_bias_4d(x.dtype, hw)               # (1, C*HW), cached
        out = _call_row_bias(x.reshape(N, C * hw), brow)    # lane-dense layout
        return out.reshape(N, C, H, W)


if __name__ == "__main__":
    key = jax.random.PRNGKey(0)
    k1, k2, k3, k4, k5 = jax.random.split(key, 5)

    # ---- tiny, spec-like shapes (exercise the XLA fallback path) ----------
    C = 4
    bias = jax.random.normal(k1, (C,), dtype=jnp.float32)
    mod = AddBiasesPallas(bias)

    x4s = jax.random.normal(k2, (2, C, 16, 16), dtype=jnp.float32)
    y4s = jax.block_until_ready(mod(x4s))
    assert y4s.shape == x4s.shape and y4s.dtype == x4s.dtype
    assert jnp.allclose(y4s, x4s + bias.reshape(1, C, 1, 1), atol=1e-6), "4D small mismatch"

    x2s = jax.random.normal(k3, (8, C), dtype=jnp.float32)
    y2s = jax.block_until_ready(mod(x2s))
    assert y2s.shape == x2s.shape and y2s.dtype == x2s.dtype
    assert jnp.allclose(y2s, x2s + bias.reshape(1, C), atol=1e-6), "2D small mismatch"

    # ---- medium shapes (exercise the Pallas path) --------------------------
    # 4-D NCHW with HW = 28*28 = 784 (not a multiple of 128, C*HW is): ~3.1 MiB
    C2 = 16
    bias2 = jax.random.normal(k1, (C2,), dtype=jnp.float32)
    mod2 = AddBiasesPallas(bias2)
    x4 = jax.random.normal(k4, (64, C2, 28, 28), dtype=jnp.float32)
    y4 = jax.block_until_ready(mod2(x4))
    assert y4.shape == x4.shape and y4.dtype == x4.dtype
    assert jnp.allclose(y4, x4 + bias2.reshape(1, C2, 1, 1), atol=1e-6), "4D mismatch"

    # 2-D with a narrow feature dim (F=5, lane-packed to k*F = multiple of 128)
    F = 5
    bias5 = jax.random.normal(k1, (F,), dtype=jnp.float32)
    mod5 = AddBiasesPallas(bias5)
    x2 = jax.random.normal(k5, (131072, F), dtype=jnp.float32)
    y2 = jax.block_until_ready(mod5(x2))
    assert y2.shape == x2.shape and y2.dtype == x2.dtype
    assert jnp.allclose(y2, x2 + bias5.reshape(1, F), atol=1e-6), "2D mismatch"

    print("KERNEL_OK")
</pallas_src>

<mosaic_0001>
module attributes {stable_mosaic.version = 11 : i64} {
  func.func @_bias_add_kernel(%arg0: i32, %arg1: i32, %arg2: memref<64x2048xf32, #tpu.memory_space<vmem>>, %arg3: memref<1x2048xf32, #tpu.memory_space<vmem>>, %arg4: memref<64x2048xf32, #tpu.memory_space<vmem>>) attributes {dimension_semantics = [#tpu.dimension_semantics<parallel>, #tpu.dimension_semantics<parallel>], iteration_bounds = array<i64: 7, 1>, scalar_prefetch = 0 : i64, scratch_operands = 0 : i64, tpu.core_type = #tpu.core_type<tc>, window_params = [{transform_indices = @transform_0, window_bounds = array<i64: 64, 2048>}, {transform_indices = @transform_1, window_bounds = array<i64: 1, 2048>}, {transform_indices = @transform_2, window_bounds = array<i64: 64, 2048>}]} {
    %c0 = arith.constant 0 : index
    %c0_0 = arith.constant 0 : index
    %0 = vector.load %arg2[%c0, %c0_0] : memref<64x2048xf32, #tpu.memory_space<vmem>>, vector<64x2048xf32>
    %c0_1 = arith.constant 0 : index
    %c0_2 = arith.constant 0 : index
    %1 = vector.load %arg3[%c0_1, %c0_2] : memref<1x2048xf32, #tpu.memory_space<vmem>>, vector<1x2048xf32>
    %2 = vector.broadcast %1 : vector<1x2048xf32> to vector<64x2048xf32>
    %3 = arith.addf %0, %2 : vector<64x2048xf32>
    %c0_3 = arith.constant 0 : index
    %c0_4 = arith.constant 0 : index
    %4 = vector.load %arg4[%c0_3, %c0_4] : memref<64x2048xf32, #tpu.memory_space<vmem>>, vector<64x2048xf32>
    tpu.vector_store %arg4[%c0_3, %c0_4], %3 {strides = array<i32>} : memref<64x2048xf32, #tpu.memory_space<vmem>>, vector<64x2048xf32>,
    return
  }
  func.func @transform_0(%arg0: i32, %arg1: i32) -> (i32, i32) {
    %c0_i32 = arith.constant 0 : i32
    return %arg1, %arg0 : i32, i32
  }
  func.func @transform_1(%arg0: i32, %arg1: i32) -> (i32, i32) {
    %c0_i32 = arith.constant 0 : i32
    %c0_i32_0 = arith.constant 0 : i32
    return %c0_i32, %arg0 : i32, i32
  }
  func.func @transform_2(%arg0: i32, %arg1: i32) -> (i32, i32) {
    %c0_i32 = arith.constant 0 : i32
    return %arg1, %arg0 : i32, i32
  }
}

</mosaic_0001>

<llo_original>
// kernel: tpu_custom_call.1
$region0: #{tpu_custom_call.1}
  #allocation0 [shape = 'u32[]', space=smem, size = 0x4, offset = 0x4, fixed_abs, tag = 'smem constant byte address 0x4 - core index']
  #allocation1 [shape = 'u32[144,128]{1,0:T(1,128)}', space=vmem, size = 0x12000, scoped, tag = 'internal scratch']
  %s0 = inlined_call_operand.hbm [shape: f32[64,12544], index: 0, kind: input, shape index: {}]
  %s1 = inlined_call_operand.hbm [shape: f32[1,12544], index: 1, kind: input, shape index: {}]
  %s2 = inlined_call_operand.hbm [shape: f32[64,12544], index: 2, kind: output, shape index: {}]
  %s3 = sld [smem:[#allocation0]]
  $region49: #{tpu_custom_call.1} parent=0
    _
  %s5 = ssub.s32 1, %s3
  %s6 = scalar_select 0, %s5, %s3
  $region1: #{tpu_custom_call.1} parent=0
    #allocation2 [shape = 'u8[1048576]{0}', space=vmem, size = 0x100000, scoped, tag = 'input window, operand 0']
    #allocation3 [shape = 's32[2]{0}', space=sflag, size = 0x8, scoped, tag = 'scoped memory for tpu_custom_call.1']
    #allocation4 [shape = 's32[2]{0}', space=sflag, size = 0x8, scoped, tag = 'scoped memory for tpu_custom_call.1']
    #allocation5 [shape = 'u8[16384]{0}', space=vmem, size = 0x4000, scoped, tag = 'input window, operand 1']
    #allocation6 [shape = 's32[2]{0}', space=sflag, size = 0x8, scoped, tag = 'scoped memory for tpu_custom_call.1']
    #allocation7 [shape = 'u8[1048576]{0}', space=vmem, size = 0x100000, scoped, tag = 'output window, operand 0']
    %7 = vsyncpa [#allocation3], 0
    %s8 = scalar_lea.sflag [#allocation3], 1
    %9 = vsyncpa %s8, 0
    %10 = vsyncpa [#allocation6], 0
    %s11 = scalar_lea.sflag [#allocation6], 1
    %12 = vsyncpa %s11, 0
    %13 = vsyncpa [#allocation4], 0
    %s14 = scalar_lea.sflag [#allocation4], 1
    %15 = vsyncpa %s14, 0
    loop: start=0, step=1, limit=9
    $region2: #{tpu_custom_call.1} parent=1 // loop_pre_header
      _
    $region3: #{tpu_custom_call.1} parent=1 // loop_header
      %s17 = sphi 0, %s21
      %p18 = scmp.ge.s32.totalorder %s17, 9
      %s24 = sphi 0, %s36
      %s25 = sphi 0, %s32
      %s26 = sphi 0, %s24
      %s27 = sphi 0, %s25
      %s28 = sphi 0, %s26
      %s29 = sphi 0, %s27
      %s41 = sphi 0, %s43
      %s44 = sphi 0, %s41
      %s45 = sphi 0, %s44
      %s61 = sphi 0, %s45
      %s67 = sphi 0, %s69
      %s70 = sphi 0, %s67
      %s71 = sphi 0, %s70
      %s87 = sphi 0, %s71
      %s95 = sphi 0, %s97
      %s98 = sphi 0, %s95
      %s99 = sphi 0, %s98
      %s115 = sphi 0, %s99
    $region4: #{tpu_custom_call.1} parent=1 // loop_header_branch
      %20 = sbr.rel (%p18) target = $region8
    $region5: #{tpu_custom_call.1} parent=1 // loop_body
      %s22 = ssub.s32 %s17, 1
      %s23 = ssub.s32 %s17, 2
      %s30 = sadd.s32 1, %s25
      %p31 = scmp.ge.s32.totalorder %s30, 1
      %s32 = scalar_select %p31, 0, %s30
      %s33 = sadd.s32 1, %s24
      %s34 = scalar_select %p31, %s33, %s24
      %p35 = scmp.ge.s32.totalorder %s34, 7
      %s36 = scalar_select %p35, 0, %s34
      %s37 = ssub.s32 %s25, %s32
      %s38 = ssub.s32 %s24, %s36
      %s39 = sor.u32 %s37, %s38
      %p40 = scmp.eq.s32.totalorder %s39, 0
      %s42 = sadd.s32 %s41, 1
      %s43 = scalar_select %p40, %s41, %s42
      %p46 = pneg %p40
      %p47 = scmp.eq.s32.totalorder %s17, 6
      %p48 = por %p46, %p47
      %p49 = scmp.ne.s32.totalorder %s41, %s44
      %p50 = scmp.eq.s32.totalorder %s17, 0
      %p51 = por %p49, %p50
      %p52 = scmp.ne.s32.totalorder %s41, %s44
      %p53 = scmp.eq.s32.totalorder %s22, 6
      %p54 = por %p52, %p53
      %p55 = scmp.ne.s32.totalorder %s44, %s45
      %p56 = scmp.eq.s32.totalorder %s22, 0
      %p57 = por %p55, %p56
      %p58 = scmp.ne.s32.totalorder %s44, %s45
      %p59 = scmp.eq.s32.totalorder %s23, 6
      %p60 = por %p58, %p59
      %p62 = scmp.ne.s32.totalorder %s45, %s61
      %p63 = scmp.eq.s32.totalorder %s23, 0
      %p64 = por %p62, %p63
      %s65 = ssub.s32 %s24, %s36
      %p66 = scmp.eq.s32.totalorder %s65, 0
      %s68 = sadd.s32 %s67, 1
      %s69 = scalar_select %p66, %s67, %s68
      %p72 = pneg %p66
      %p73 = scmp.eq.s32.totalorder %s17, 6
      %p74 = por %p72, %p73
      %p75 = scmp.ne.s32.totalorder %s67, %s70
      %p76 = scmp.eq.s32.totalorder %s17, 0
      %p77 = por %p75, %p76
      %p78 = scmp.ne.s32.totalorder %s67, %s70
      %p79 = scmp.eq.s32.totalorder %s22, 6
      %p80 = por %p78, %p79
      %p81 = scmp.ne.s32.totalorder %s70, %s71
      %p82 = scmp.eq.s32.totalorder %s22, 0
      %p83 = por %p81, %p82
      %p84 = scmp.ne.s32.totalorder %s70, %s71
      %p85 = scmp.eq.s32.totalorder %s23, 6
      %p86 = por %p84, %p85
      %p88 = scmp.ne.s32.totalorder %s71, %s87
      %p89 = scmp.eq.s32.totalorder %s23, 0
      %p90 = por %p88, %p89
      %s91 = ssub.s32 %s25, %s32
      %s92 = ssub.s32 %s24, %s36
      %s93 = sor.u32 %s91, %s92
      %p94 = scmp.eq.s32.totalorder %s93, 0
      %s96 = sadd.s32 %s95, 1
      %s97 = scalar_select %p94, %s95, %s96
      %p100 = pneg %p94
      %p101 = scmp.eq.s32.totalorder %s17, 6
      %p102 = por %p100, %p101
      %p103 = scmp.ne.s32.totalorder %s95, %s98
      %p104 = scmp.eq.s32.totalorder %s17, 0
      %p105 = por %p103, %p104
      %p106 = scmp.ne.s32.totalorder %s95, %s98
      %p107 = scmp.eq.s32.totalorder %s22, 6
      %p108 = por %p106, %p107
      %p109 = scmp.ne.s32.totalorder %s98, %s99
      %p110 = scmp.eq.s32.totalorder %s22, 0
      %p111 = por %p109, %p110
      %p112 = scmp.ne.s32.totalorder %s98, %s99
      %p113 = scmp.eq.s32.totalorder %s23, 6
      %p114 = por %p112, %p113
      %p116 = scmp.ne.s32.totalorder %s99, %s115
      %p117 = scmp.eq.s32.totalorder %s23, 0
      %p118 = por %p116, %p117
      %p119 = scmp.le.s32.totalorder 1, %s17
      %p120 = scmp.lt.s32.totalorder %s17, 8
      %p121 = pnand %p119, %p120
      %p122 = pneg %p121
      // Predicated region
      $region9: #{tpu_custom_call.1} parent=5 // pred_check
        _
      $region10: #{tpu_custom_call.1} parent=5 // pred_check_branch
        %124 = sbr.rel (%p121) target = $region12
      $region11: #{tpu_custom_call.1} parent=5 // pred_region
        %s125 = ssub.s32 %s17, 1
      $region12: #{tpu_custom_call.1} parent=5 // pred_fallthru
        _
      %p126 = scmp.lt.s32.totalorder %s17, 7
      // Predicated region
      $region13: #{tpu_custom_call.1} parent=5 // pred_check
        %p127 = pneg %p126
      $region14: #{tpu_custom_call.1} parent=5 // pred_check_branch
        %129 = sbr.rel (%p127) target = $region16
      $region15: #{tpu_custom_call.1} parent=5 // pred_region
        // Predicated region
        $region17: #{tpu_custom_call.1} parent=15 // pred_check
          %p130 = pneg %p51
        $region18: #{tpu_custom_call.1} parent=15 // pred_check_branch
          %132 = sbr.rel (%p130) target = $region20
        $region19: #{tpu_custom_call.1} parent=15 // pred_region
          %s133 = sand.u32 %s41, 1
          %s134 = scalar_lea.sflag [#allocation3], %s133
          %s135 = sand.u32 %s41, 1
          %s136 = smul.addr %s135, 1024
          %s137 = scalar_lea.vmem [#allocation2], %s136
          %s138 = smul.u32 8, %s25
          %s139 = smul.u32 16, %s24
          %s140 = ssub.s32 98, %s139
          %p141 = scmp.lt.s32.totalorder %s140, 16
          %s142 = scalar_select %p141, %s140, 16
          %s143 = smul.u32 1024, %s142
          %s145 = ssub.s32 16384, %s143
          %146 = vsyncadd %s134, %s145
          %p147 = scmp.ne.s32.totalorder 0, %s143
          %s148 = smul.addr %s138, 98
          %s149 = sadd.s32 %s139, %s148
          %s150 = smul.addr %s149, 128
          %s151 = scalar_lea.hbm %s0, %s150
          %s152 = smul.u32 %s142, 8
          %s153 = smul.u32 %s152, 8
          %s154 = sshll.u32 %s137, 4
          %s155 = int_to_ptr.vmem [resolvable:$true] %s154
          %s156 = sshll.u32 %s153, 4
          %160 = dma.hbm_to_vmem [thread:$0]  (%p147), %s151, %s156, %s155, %s134, 12544, 2048, %s152
        $region20: #{tpu_custom_call.1} parent=15 // pred_fallthru
          _
        // Predicated region
        $region21: #{tpu_custom_call.1} parent=15 // pred_check
          %p161 = pneg %p77
        $region22: #{tpu_custom_call.1} parent=15 // pred_check_branch
          %163 = sbr.rel (%p161) target = $region24
        $region23: #{tpu_custom_call.1} parent=15 // pred_region
          %s164 = sand.u32 %s67, 1
          %s165 = scalar_lea.sflag [#allocation6], %s164
          %s166 = sand.u32 %s67, 1
          %s167 = smul.addr %s166, 16
          %s168 = scalar_lea.vmem [#allocation5], %s167
          %s169 = smul.u32 16, %s24
          %s170 = ssub.s32 98, %s169
          %p171 = scmp.lt.s32.totalorder %s170, 16
          %s172 = scalar_select %p171, %s170, 16
          %s173 = smul.u32 16, %s172
          %s175 = ssub.s32 256, %s173
          %176 = vsyncadd %s165, %s175
          %p177 = scmp.ne.s32.totalorder 0, %s173
          %s178 = smul.addr %s169, 16
          %s179 = scalar_lea.hbm %s1, %s178
          %s180 = sshll.u32 %s172, 4
          %s181 = sshll.u32 %s168, 4
          %s182 = int_to_ptr.vmem [resolvable:$true] %s181
          %184 = dma.hbm_to_vmem [thread:$0]  (%p177), %s179, %s180, %s182, %s165
        $region24: #{tpu_custom_call.1} parent=15 // pred_fallthru
          _
      $region16: #{tpu_custom_call.1} parent=5 // pred_fallthru
        _
      %p185 = scmp.le.s32.totalorder 1, %s17
      %p186 = scmp.lt.s32.totalorder %s17, 8
      %p187 = pnand %p185, %p186
      %p188 = pneg %p187
      // Predicated region
      $region25: #{tpu_custom_call.1} parent=5 // pred_check
        _
      $region26: #{tpu_custom_call.1} parent=5 // pred_check_branch
        %190 = sbr.rel (%p187) target = $region28
      $region27: #{tpu_custom_call.1} parent=5 // pred_region
        %s191 = ssub.s32 %s17, 1
        %s192 = sand.u32 %s44, 1
        %s193 = scalar_lea.sflag [#allocation3], %s192
        %s194 = sand.u32 %s44, 1
        %s195 = smul.addr %s194, 1024
        %s196 = scalar_lea.vmem [#allocation2], %s195
        // Predicated region
        $region29: #{tpu_custom_call.1} parent=27 // pred_check
          %p197 = pneg %p57
        $region30: #{tpu_custom_call.1} parent=27 // pred_check_branch
          %199 = sbr.rel (%p197) target = $region32
        $region31: #{tpu_custom_call.1} parent=27 // pred_region
          %200 = dma.done %s193, 16384
        $region32: #{tpu_custom_call.1} parent=27 // pred_fallthru
          _
        %s201 = sand.u32 %s70, 1
        %s202 = scalar_lea.sflag [#allocation6], %s201
        %s203 = sand.u32 %s70, 1
        %s204 = smul.addr %s203, 16
        %s205 = scalar_lea.vmem [#allocation5], %s204
        // Predicated region
        $region33: #{tpu_custom_call.1} parent=27 // pred_check
          %p206 = pneg %p83
        $region34: #{tpu_custom_call.1} parent=27 // pred_check_branch
          %208 = sbr.rel (%p206) target = $region36
        $region35: #{tpu_custom_call.1} parent=27 // pred_region
          %209 = dma.done %s202, 256
        $region36: #{tpu_custom_call.1} parent=27 // pred_fallthru
          _
        %s210 = sand.u32 %s44, 1
        %s211 = scalar_lea.sflag [#allocation3], %s210
        %s212 = sand.u32 %s44, 1
        %s213 = smul.addr %s212, 1024
        %s214 = scalar_lea.vmem [#allocation2], %s213
        %p215 = pneg %p57
        %p216 = pneg %p54
        %s217 = sand.u32 %s70, 1
        %s218 = scalar_lea.sflag [#allocation6], %s217
        %s219 = sand.u32 %s70, 1
        %s220 = smul.addr %s219, 16
        %s221 = scalar_lea.vmem [#allocation5], %s220
        %p222 = pneg %p83
        %p223 = pneg %p80
        %p224 = pneg %p111
        %p225 = pneg %p108
        %s226 = sand.u32 %s98, 1
        %s227 = scalar_lea.sflag [#allocation4], %s226
        %s228 = sand.u32 %s98, 1
        %s229 = smul.addr %s228, 1024
        %s230 = scalar_lea.vmem [#allocation7], %s229
        %s231 = smul.u32 8, %s27
        %s232 = smul.u32 16, %s26
        %s233 = ssub.s32 98, %s232
        %p234 = scmp.lt.s32.totalorder %s233, 16
        %s235 = scalar_select %p234, %s233, 16
        %s236 = smul.u32 1024, %s235
        %s237 = smul.u32 16, %s26
        %s238 = ssub.s32 98, %s237
        %p239 = scmp.lt.s32.totalorder %s238, 16
        %s240 = scalar_select %p239, %s238, 16
        %s241 = smul.u32 16, %s240
        %s242 = smul.u32 8, %s27
        %s243 = smul.u32 16, %s26
        %s244 = ssub.s32 98, %s243
        %p245 = scmp.lt.s32.totalorder %s244, 16
        %s246 = scalar_select %p245, %s244, 16
        %s247 = smul.u32 1024, %s246
        %v248 = vld [vmem:[%s196] sm:$0xff]
        %v249 = vld [vmem:[%s196 + $0x8] sm:$0xff]
        %v250 = vld [vmem:[%s196 + $0x10] sm:$0xff]
        %v251 = vld [vmem:[%s196 + $0x18] sm:$0xff]
        %v252 = vld [vmem:[%s196 + $0x20] sm:$0xff]
        %v253 = vld [vmem:[%s196 + $0x28] sm:$0xff]
        %v254 = vld [vmem:[%s196 + $0x30] sm:$0xff]
        %v255 = vld [vmem:[%s196 + $0x38] sm:$0xff]
        %v256 = vld [vmem:[%s196 + $0x40] sm:$0xff]
        %v257 = vld [vmem:[%s196 + $0x48] sm:$0xff]
        %v258 = vld [vmem:[%s196 + $0x50] sm:$0xff]
        %v259 = vld [vmem:[%s196 + $0x58] sm:$0xff]
        %v260 = vld [vmem:[%s196 + $0x60] sm:$0xff]
        %v261 = vld [vmem:[%s196 + $0x68] sm:$0xff]
        %v262 = vld [vmem:[%s196 + $0x70] sm:$0xff]
        %v263 = vld [vmem:[%s196 + $0x78] sm:$0xff]
        %v264 = vld [vmem:[%s196 + $0x80] sm:$0xff]
        %v265 = vld [vmem:[%s196 + $0x88] sm:$0xff]
        %v266 = vld [vmem:[%s196 + $0x90] sm:$0xff]
        %v267 = vld [vmem:[%s196 + $0x98] sm:$0xff]
        %v268 = vld [vmem:[%s196 + $0xa0] sm:$0xff]
        %v269 = vld [vmem:[%s196 + $0xa8] sm:$0xff]
        %v270 = vld [vmem:[%s196 + $0xb0] sm:$0xff]
        %v271 = vld [vmem:[%s196 + $0xb8] sm:$0xff]
        %v272 = vld [vmem:[%s196 + $0xc0] sm:$0xff]
        %v273 = vld [vmem:[%s196 + $0xc8] sm:$0xff]
        %v274 = vld [vmem:[%s196 + $0xd0] sm:$0xff]
        %v275 = vld [vmem:[%s196 + $0xd8] sm:$0xff]
        %v276 = vld [vmem:[%s196 + $0xe0] sm:$0xff]
        %v277 = vld [vmem:[%s196 + $0xe8] sm:$0xff]
        %v278 = vld [vmem:[%s196 + $0xf0] sm:$0xff]
        %v279 = vld [vmem:[%s196 + $0xf8] sm:$0xff]
        %v280 = vld [vmem:[%s196 + $0x100] sm:$0xff]
        %v281 = vld [vmem:[%s196 + $0x108] sm:$0xff]
        %v282 = vld [vmem:[%s196 + $0x110] sm:$0xff]
        %v283 = vld [vmem:[%s196 + $0x118] sm:$0xff]
        %v284 = vld [vmem:[%s196 + $0x120] sm:$0xff]
        %v285 = vld [vmem:[%s196 + $0x128] sm:$0xff]
        %v286 = vld [vmem:[%s196 + $0x130] sm:$0xff]
        %v287 = vld [vmem:[%s196 + $0x138] sm:$0xff]
        %v288 = vld [vmem:[%s196 + $0x140] sm:$0xff]
        %v289 = vld [vmem:[%s196 + $0x148] sm:$0xff]
        %v290 = vld [vmem:[%s196 + $0x150] sm:$0xff]
        %v291 = vld [vmem:[%s196 + $0x158] sm:$0xff]
        %v292 = vld [vmem:[%s196 + $0x160] sm:$0xff]
        %v293 = vld [vmem:[%s196 + $0x168] sm:$0xff]
        %v294 = vld [vmem:[%s196 + $0x170] sm:$0xff]
        %v295 = vld [vmem:[%s196 + $0x178] sm:$0xff]
        %v296 = vld [vmem:[%s196 + $0x180] sm:$0xff]
        %v297 = vld [vmem:[%s196 + $0x188] sm:$0xff]
        %v298 = vld [vmem:[%s196 + $0x190] sm:$0xff]
        %v299 = vld [vmem:[%s196 + $0x198] sm:$0xff]
        %v300 = vld [vmem:[%s196 + $0x1a0] sm:$0xff]
        %v301 = vld [vmem:[%s196 + $0x1a8] sm:$0xff]
        %v302 = vld [vmem:[%s196 + $0x1b0] sm:$0xff]
        %v303 = vld [vmem:[%s196 + $0x1b8] sm:$0xff]
        %v304 = vld [vmem:[%s196 + $0x1c0] sm:$0xff]
        %v305 = vld [vmem:[%s196 + $0x1c8] sm:$0xff]
        %v306 = vld [vmem:[%s196 + $0x1d0] sm:$0xff]
        %v307 = vld [vmem:[%s196 + $0x1d8] sm:$0xff]
        %v308 = vld [vmem:[%s196 + $0x1e0] sm:$0xff]
        %v309 = vld [vmem:[%s196 + $0x1e8] sm:$0xff]
        %v310 = vld [vmem:[%s196 + $0x1f0] sm:$0xff]
        %v311 = vld [vmem:[%s196 + $0x1f8] sm:$0xff]
        %v312 = vld [vmem:[%s196 + $0x200] sm:$0xff]
        %v313 = vld [vmem:[%s196 + $0x208] sm:$0xff]
        %v314 = vld [vmem:[%s196 + $0x210] sm:$0xff]
        %v315 = vld [vmem:[%s196 + $0x218] sm:$0xff]
        %v316 = vld [vmem:[%s196 + $0x220] sm:$0xff]
        %v317 = vld [vmem:[%s196 + $0x228] sm:$0xff]
        %v318 = vld [vmem:[%s196 + $0x230] sm:$0xff]
        %v319 = vld [vmem:[%s196 + $0x238] sm:$0xff]
        %v320 = vld [vmem:[%s196 + $0x240] sm:$0xff]
        %v321 = vld [vmem:[%s196 + $0x248] sm:$0xff]
        %v322 = vld [vmem:[%s196 + $0x250] sm:$0xff]
        %v323 = vld [vmem:[%s196 + $0x258] sm:$0xff]
        %v324 = vld [vmem:[%s196 + $0x260] sm:$0xff]
        %v325 = vld [vmem:[%s196 + $0x268] sm:$0xff]
        %v326 = vld [vmem:[%s196 + $0x270] sm:$0xff]
        %v327 = vld [vmem:[%s196 + $0x278] sm:$0xff]
        %v328 = vld [vmem:[%s196 + $0x280] sm:$0xff]
        %v329 = vld [vmem:[%s196 + $0x288] sm:$0xff]
        %v330 = vld [vmem:[%s196 + $0x290] sm:$0xff]
        %v331 = vld [vmem:[%s196 + $0x298] sm:$0xff]
        %v332 = vld [vmem:[%s196 + $0x2a0] sm:$0xff]
        %v333 = vld [vmem:[%s196 + $0x2a8] sm:$0xff]
        %v334 = vld [vmem:[%s196 + $0x2b0] sm:$0xff]
        %v335 = vld [vmem:[%s196 + $0x2b8] sm:$0xff]
        %v336 = vld [vmem:[%s196 + $0x2c0] sm:$0xff]
        %v337 = vld [vmem:[%s196 + $0x2c8] sm:$0xff]
        %v338 = vld [vmem:[%s196 + $0x2d0] sm:$0xff]
        %v339 = vld [vmem:[%s196 + $0x2d8] sm:$0xff]
        %v340 = vld [vmem:[%s196 + $0x2e0] sm:$0xff]
        %v341 = vld [vmem:[%s196 + $0x2e8] sm:$0xff]
        %v342 = vld [vmem:[%s196 + $0x2f0] sm:$0xff]
        %v343 = vld [vmem:[%s196 + $0x2f8] sm:$0xff]
        %v344 = vld [vmem:[%s196 + $0x300] sm:$0xff]
        %v345 = vld [vmem:[%s196 + $0x308] sm:$0xff]
        %v346 = vld [vmem:[%s196 + $0x310] sm:$0xff]
        %v347 = vld [vmem:[%s196 + $0x318] sm:$0xff]
        %v348 = vld [vmem:[%s196 + $0x320] sm:$0xff]
        %v349 = vld [vmem:[%s196 + $0x328] sm:$0xff]
        %v350 = vld [vmem:[%s196 + $0x330] sm:$0xff]
        %v351 = vld [vmem:[%s196 + $0x338] sm:$0xff]
        %v352 = vld [vmem:[%s196 + $0x340] sm:$0xff]
        %v353 = vld [vmem:[%s196 + $0x348] sm:$0xff]
        %v354 = vld [vmem:[%s196 + $0x350] sm:$0xff]
        %v355 = vld [vmem:[%s196 + $0x358] sm:$0xff]
        %v356 = vld [vmem:[%s196 + $0x360] sm:$0xff]
        %v357 = vld [vmem:[%s196 + $0x368] sm:$0xff]
        %v358 = vld [vmem:[%s196 + $0x370] sm:$0xff]
        %v359 = vld [vmem:[%s196 + $0x378] sm:$0xff]
        %v360 = vld [vmem:[%s196 + $0x380] sm:$0xff]
        %v361 = vld [vmem:[%s196 + $0x388] sm:$0xff]
        %v362 = vld [vmem:[%s196 + $0x390] sm:$0xff]
        %v363 = vld [vmem:[%s196 + $0x398] sm:$0xff]
        %v364 = vld [vmem:[%s196 + $0x3a0] sm:$0xff]
        %v365 = vld [vmem:[%s196 + $0x3a8] sm:$0xff]
        %v366 = vld [vmem:[%s196 + $0x3b0] sm:$0xff]
        %v367 = vld [vmem:[%s196 + $0x3b8] sm:$0xff]
        %v368 = vld [vmem:[%s196 + $0x3c0] sm:$0xff]
        %v369 = vld [vmem:[%s196 + $0x3c8] sm:$0xff]
        %v370 = vld [vmem:[%s196 + $0x3d0] sm:$0xff]
        %v371 = vld [vmem:[%s196 + $0x3d8] sm:$0xff]
        %v372 = vld [vmem:[%s196 + $0x3e0] sm:$0xff]
        %v373 = vld [vmem:[%s196 + $0x3e8] sm:$0xff]
        %v374 = vld [vmem:[%s196 + $0x3f0] sm:$0xff]
        %v375 = vld [vmem:[%s196 + $0x3f8] sm:$0xff]
        %v376 = vld [vmem:[%s205] sm:$0xff]
        %v377 = vld [vmem:[%s205 + $0x8] sm:$0xff]
        %v380 = vlaneseq
        %v381 = vshrl.u32 %v380, 7
        %v382 = vsub.s32 0, %v381
        %v383 = vrot.slane %v376, %v382
        %v384 = vlaneseq
        %v385 = vshrl.u32 %v384, 7
        %v386 = vsub.s32 1, %v385
        %v387 = vrot.slane %v376, %v386
        %v388 = vlaneseq
        %v389 = vshrl.u32 %v388, 7
        %v390 = vsub.s32 2, %v389
        %v391 = vrot.slane %v376, %v390
        %v392 = vlaneseq
        %v393 = vshrl.u32 %v392, 7
        %v394 = vsub.s32 3, %v393
        %v395 = vrot.slane %v376, %v394
        %v396 = vlaneseq
        %v397 = vshrl.u32 %v396, 7
        %v398 = vsub.s32 4, %v397
        %v399 = vrot.slane %v376, %v398
        %v400 = vlaneseq
        %v401 = vshrl.u32 %v400, 7
        %v402 = vsub.s32 5, %v401
        %v403 = vrot.slane %v376, %v402
        %v404 = vlaneseq
        %v405 = vshrl.u32 %v404, 7
        %v406 = vsub.s32 6, %v405
        %v407 = vrot.slane %v376, %v406
        %v408 = vlaneseq
        %v409 = vshrl.u32 %v408, 7
        %v410 = vsub.s32 7, %v409
        %v411 = vrot.slane %v376, %v410
        %v412 = vlaneseq
        %v413 = vshrl.u32 %v412, 7
        %v414 = vsub.s32 0, %v413
        %v415 = vrot.slane %v377, %v414
        %v416 = vlaneseq
        %v417 = vshrl.u32 %v416, 7
        %v418 = vsub.s32 1, %v417
        %v419 = vrot.slane %v377, %v418
        %v420 = vlaneseq
        %v421 = vshrl.u32 %v420, 7
        %v422 = vsub.s32 2, %v421
        %v423 = vrot.slane %v377, %v422
        %v424 = vlaneseq
        %v425 = vshrl.u32 %v424, 7
        %v426 = vsub.s32 3, %v425
        %v427 = vrot.slane %v377, %v426
        %v428 = vlaneseq
        %v429 = vshrl.u32 %v428, 7
        %v430 = vsub.s32 4, %v429
        %v431 = vrot.slane %v377, %v430
        %v432 = vlaneseq
        %v433 = vshrl.u32 %v432, 7
        %v434 = vsub.s32 5, %v433
        %v435 = vrot.slane %v377, %v434
        %v436 = vlaneseq
        %v437 = vshrl.u32 %v436, 7
        %v438 = vsub.s32 6, %v437
        %v439 = vrot.slane %v377, %v438
        %v440 = vlaneseq
        %v441 = vshrl.u32 %v440, 7
        %v442 = vsub.s32 7, %v441
        %v443 = vrot.slane %v377, %v442
        %v460 = vadd.f32 %v248, %v383
        %v461 = vadd.f32 %v249, %v387
        %v462 = vadd.f32 %v250, %v391
        %v463 = vadd.f32 %v251, %v395
        %v464 = vadd.f32 %v252, %v399
        %v465 = vadd.f32 %v253, %v403
        %v466 = vadd.f32 %v254, %v407
        %v467 = vadd.f32 %v255, %v411
        %v468 = vadd.f32 %v256, %v415
        %v469 = vadd.f32 %v257, %v419
        %v470 = vadd.f32 %v258, %v423
        %v471 = vadd.f32 %v259, %v427
        %v472 = vadd.f32 %v260, %v431
        %v473 = vadd.f32 %v261, %v435
        %v474 = vadd.f32 %v262, %v439
        %v475 = vadd.f32 %v263, %v443
        %v476 = vadd.f32 %v264, %v383
        %v477 = vadd.f32 %v265, %v387
        %v478 = vadd.f32 %v266, %v391
        %v479 = vadd.f32 %v267, %v395
        %v480 = vadd.f32 %v268, %v399
        %v481 = vadd.f32 %v269, %v403
        %v482 = vadd.f32 %v270, %v407
        %v483 = vadd.f32 %v271, %v411
        %v484 = vadd.f32 %v272, %v415
        %v485 = vadd.f32 %v273, %v419
        %v486 = vadd.f32 %v274, %v423
        %v487 = vadd.f32 %v275, %v427
        %v488 = vadd.f32 %v276, %v431
        %v489 = vadd.f32 %v277, %v435
        %v490 = vadd.f32 %v278, %v439
        %v491 = vadd.f32 %v279, %v443
        %v492 = vadd.f32 %v280, %v383
        %v493 = vadd.f32 %v281, %v387
        %v494 = vadd.f32 %v282, %v391
        %v495 = vadd.f32 %v283, %v395
        %v496 = vadd.f32 %v284, %v399
        %v497 = vadd.f32 %v285, %v403
        %v498 = vadd.f32 %v286, %v407
        %v499 = vadd.f32 %v287, %v411
        %v500 = vadd.f32 %v288, %v415
        %v501 = vadd.f32 %v289, %v419
        %v502 = vadd.f32 %v290, %v423
        %v503 = vadd.f32 %v291, %v427
        %v504 = vadd.f32 %v292, %v431
        %v505 = vadd.f32 %v293, %v435
        %v506 = vadd.f32 %v294, %v439
        %v507 = vadd.f32 %v295, %v443
        %v508 = vadd.f32 %v296, %v383
        %v509 = vadd.f32 %v297, %v387
        %v510 = vadd.f32 %v298, %v391
        %v511 = vadd.f32 %v299, %v395
        %v512 = vadd.f32 %v300, %v399
        %v513 = vadd.f32 %v301, %v403
        %v514 = vadd.f32 %v302, %v407
        %v515 = vadd.f32 %v303, %v411
        %v516 = vadd.f32 %v304, %v415
        %v517 = vadd.f32 %v305, %v419
        %v518 = vadd.f32 %v306, %v423
        %v519 = vadd.f32 %v307, %v427
        %v520 = vadd.f32 %v308, %v431
        %v521 = vadd.f32 %v309, %v435
        %v522 = vadd.f32 %v310, %v439
        %v523 = vadd.f32 %v311, %v443
        %v524 = vadd.f32 %v312, %v383
        %v525 = vadd.f32 %v313, %v387
        %v526 = vadd.f32 %v314, %v391
        %v527 = vadd.f32 %v315, %v395
        %v528 = vadd.f32 %v316, %v399
        %v529 = vadd.f32 %v317, %v403
        %v530 = vadd.f32 %v318, %v407
        %v531 = vadd.f32 %v319, %v411
        %v532 = vadd.f32 %v320, %v415
        %v533 = vadd.f32 %v321, %v419
        %v534 = vadd.f32 %v322, %v423
        %v535 = vadd.f32 %v323, %v427
        %v536 = vadd.f32 %v324, %v431
        %v537 = vadd.f32 %v325, %v435
        %v538 = vadd.f32 %v326, %v439
        %v539 = vadd.f32 %v327, %v443
        %v540 = vadd.f32 %v328, %v383
        %v541 = vadd.f32 %v329, %v387
        %v542 = vadd.f32 %v330, %v391
        %v543 = vadd.f32 %v331, %v395
        %v544 = vadd.f32 %v332, %v399
        %v545 = vadd.f32 %v333, %v403
        %v546 = vadd.f32 %v334, %v407
        %v547 = vadd.f32 %v335, %v411
        %v548 = vadd.f32 %v336, %v415
        %v549 = vadd.f32 %v337, %v419
        %v550 = vadd.f32 %v338, %v423
        %v551 = vadd.f32 %v339, %v427
        %v552 = vadd.f32 %v340, %v431
        %v553 = vadd.f32 %v341, %v435
        %v554 = vadd.f32 %v342, %v439
        %v555 = vadd.f32 %v343, %v443
        %v556 = vadd.f32 %v344, %v383
        %v557 = vadd.f32 %v345, %v387
        %v558 = vadd.f32 %v346, %v391
        %v559 = vadd.f32 %v347, %v395
        %v560 = vadd.f32 %v348, %v399
        %v561 = vadd.f32 %v349, %v403
        %v562 = vadd.f32 %v350, %v407
        %v563 = vadd.f32 %v351, %v411
        %v564 = vadd.f32 %v352, %v415
        %v565 = vadd.f32 %v353, %v419
        %v566 = vadd.f32 %v354, %v423
        %v567 = vadd.f32 %v355, %v427
        %v568 = vadd.f32 %v356, %v431
        %v569 = vadd.f32 %v357, %v435
        %v570 = vadd.f32 %v358, %v439
        %v571 = vadd.f32 %v359, %v443
        %v572 = vadd.f32 %v360, %v383
        %v573 = vadd.f32 %v361, %v387
        %v574 = vadd.f32 %v362, %v391
        %v575 = vadd.f32 %v363, %v395
        %v576 = vadd.f32 %v364, %v399
        %v577 = vadd.f32 %v365, %v403
        %v578 = vadd.f32 %v366, %v407
        %v579 = vadd.f32 %v367, %v411
        %v580 = vadd.f32 %v368, %v415
        %v581 = vadd.f32 %v369, %v419
        %v582 = vadd.f32 %v370, %v423
        %v583 = vadd.f32 %v371, %v427
        %v584 = vadd.f32 %v372, %v431
        %v585 = vadd.f32 %v373, %v435
        %v586 = vadd.f32 %v374, %v439
        %v587 = vadd.f32 %v375, %v443
        %588 = vst [vmem:[%s230] sm:$0xff] %v460
        %589 = vst [vmem:[%s230 + $0x8] sm:$0xff] %v461
        %590 = vst [vmem:[%s230 + $0x10] sm:$0xff] %v462
        %591 = vst [vmem:[%s230 + $0x18] sm:$0xff] %v463
        %592 = vst [vmem:[%s230 + $0x20] sm:$0xff] %v464
        %593 = vst [vmem:[%s230 + $0x28] sm:$0xff] %v465
        %594 = vst [vmem:[%s230 + $0x30] sm:$0xff] %v466
        %595 = vst [vmem:[%s230 + $0x38] sm:$0xff] %v467
        %596 = vst [vmem:[%s230 + $0x40] sm:$0xff] %v468
        %597 = vst [vmem:[%s230 + $0x48] sm:$0xff] %v469
        %598 = vst [vmem:[%s230 + $0x50] sm:$0xff] %v470
        %599 = vst [vmem:[%s230 + $0x58] sm:$0xff] %v471
        %600 = vst [vmem:[%s230 + $0x60] sm:$0xff] %v472
        %601 = vst [vmem:[%s230 + $0x68] sm:$0xff] %v473
        %602 = vst [vmem:[%s230 + $0x70] sm:$0xff] %v474
        %603 = vst [vmem:[%s230 + $0x78] sm:$0xff] %v475
        %604 = vst [vmem:[%s230 + $0x80] sm:$0xff] %v476
        %605 = vst [vmem:[%s230 + $0x88] sm:$0xff] %v477
        %606 = vst [vmem:[%s230 + $0x90] sm:$0xff] %v478
        %607 = vst [vmem:[%s230 + $0x98] sm:$0xff] %v479
        %608 = vst [vmem:[%s230 + $0xa0] sm:$0xff] %v480
        %609 = vst [vmem:[%s230 + $0xa8] sm:$0xff] %v481
        %610 = vst [vmem:[%s230 + $0xb0] sm:$0xff] %v482
        %611 = vst [vmem:[%s230 + $0xb8] sm:$0xff] %v483
        %612 = vst [vmem:[%s230 + $0xc0] sm:$0xff] %v484
        %613 = vst [vmem:[%s230 + $0xc8] sm:$0xff] %v485
        %614 = vst [vmem:[%s230 + $0xd0] sm:$0xff] %v486
        %615 = vst [vmem:[%s230 + $0xd8] sm:$0xff] %v487
        %616 = vst [vmem:[%s230 + $0xe0] sm:$0xff] %v488
        %617 = vst [vmem:[%s230 + $0xe8] sm:$0xff] %v489
        %618 = vst [vmem:[%s230 + $0xf0] sm:$0xff] %v490
        %619 = vst [vmem:[%s230 + $0xf8] sm:$0xff] %v491
        %620 = vst [vmem:[%s230 + $0x100] sm:$0xff] %v492
        %621 = vst [vmem:[%s230 + $0x108] sm:$0xff] %v493
        %622 = vst [vmem:[%s230 + $0x110] sm:$0xff] %v494
        %623 = vst [vmem:[%s230 + $0x118] sm:$0xff] %v495
        %624 = vst [vmem:[%s230 + $0x120] sm:$0xff] %v496
        %625 = vst [vmem:[%s230 + $0x128] sm:$0xff] %v497
        %626 = vst [vmem:[%s230 + $0x130] sm:$0xff] %v498
        %627 = vst [vmem:[%s230 + $0x138] sm:$0xff] %v499
        %628 = vst [vmem:[%s230 + $0x140] sm:$0xff] %v500
        %629 = vst [vmem:[%s230 + $0x148] sm:$0xff] %v501
        %630 = vst [vmem:[%s230 + $0x150] sm:$0xff] %v502
        %631 = vst [vmem:[%s230 + $0x158] sm:$0xff] %v503
        %632 = vst [vmem:[%s230 + $0x160] sm:$0xff] %v504
        %633 = vst [vmem:[%s230 + $0x168] sm:$0xff] %v505
        %634 = vst [vmem:[%s230 + $0x170] sm:$0xff] %v506
        %635 = vst [vmem:[%s230 + $0x178] sm:$0xff] %v507
        %636 = vst [vmem:[%s230 + $0x180] sm:$0xff] %v508
        %637 = vst [vmem:[%s230 + $0x188] sm:$0xff] %v509
        %638 = vst [vmem:[%s230 + $0x190] sm:$0xff] %v510
        %639 = vst [vmem:[%s230 + $0x198] sm:$0xff] %v511
        %640 = vst [vmem:[%s230 + $0x1a0] sm:$0xff] %v512
        %641 = vst [vmem:[%s230 + $0x1a8] sm:$0xff] %v513
        %642 = vst [vmem:[%s230 + $0x1b0] sm:$0xff] %v514
        %643 = vst [vmem:[%s230 + $0x1b8] sm:$0xff] %v515
        %644 = vst [vmem:[%s230 + $0x1c0] sm:$0xff] %v516
        %645 = vst [vmem:[%s230 + $0x1c8] sm:$0xff] %v517
        %646 = vst [vmem:[%s230 + $0x1d0] sm:$0xff] %v518
        %647 = vst [vmem:[%s230 + $0x1d8] sm:$0xff] %v519
        %648 = vst [vmem:[%s230 + $0x1e0] sm:$0xff] %v520
        %649 = vst [vmem:[%s230 + $0x1e8] sm:$0xff] %v521
        %650 = vst [vmem:[%s230 + $0x1f0] sm:$0xff] %v522
        %651 = vst [vmem:[%s230 + $0x1f8] sm:$0xff] %v523
        %652 = vst [vmem:[%s230 + $0x200] sm:$0xff] %v524
        %653 = vst [vmem:[%s230 + $0x208] sm:$0xff] %v525
        %654 = vst [vmem:[%s230 + $0x210] sm:$0xff] %v526
        %655 = vst [vmem:[%s230 + $0x218] sm:$0xff] %v527
        %656 = vst [vmem:[%s230 + $0x220] sm:$0xff] %v528
        %657 = vst [vmem:[%s230 + $0x228] sm:$0xff] %v529
        %658 = vst [vmem:[%s230 + $0x230] sm:$0xff] %v530
        %659 = vst [vmem:[%s230 + $0x238] sm:$0xff] %v531
        %660 = vst [vmem:[%s230 + $0x240] sm:$0xff] %v532
        %661 = vst [vmem:[%s230 + $0x248] sm:$0xff] %v533
        %662 = vst [vmem:[%s230 + $0x250] sm:$0xff] %v534
        %663 = vst [vmem:[%s230 + $0x258] sm:$0xff] %v535
        %664 = vst [vmem:[%s230 + $0x260] sm:$0xff] %v536
        %665 = vst [vmem:[%s230 + $0x268] sm:$0xff] %v537
        %666 = vst [vmem:[%s230 + $0x270] sm:$0xff] %v538
        %667 = vst [vmem:[%s230 + $0x278] sm:$0xff] %v539
        %668 = vst [vmem:[%s230 + $0x280] sm:$0xff] %v540
        %669 = vst [vmem:[%s230 + $0x288] sm:$0xff] %v541
        %670 = vst [vmem:[%s230 + $0x290] sm:$0xff] %v542
        %671 = vst [vmem:[%s230 + $0x298] sm:$0xff] %v543
        %672 = vst [vmem:[%s230 + $0x2a0] sm:$0xff] %v544
        %673 = vst [vmem:[%s230 + $0x2a8] sm:$0xff] %v545
        %674 = vst [vmem:[%s230 + $0x2b0] sm:$0xff] %v546
        %675 = vst [vmem:[%s230 + $0x2b8] sm:$0xff] %v547
        %676 = vst [vmem:[%s230 + $0x2c0] sm:$0xff] %v548
        %677 = vst [vmem:[%s230 + $0x2c8] sm:$0xff] %v549
        %678 = vst [vmem:[%s230 + $0x2d0] sm:$0xff] %v550
        %679 = vst [vmem:[%s230 + $0x2d8] sm:$0xff] %v551
        %680 = vst [vmem:[%s230 + $0x2e0] sm:$0xff] %v552
        %681 = vst [vmem:[%s230 + $0x2e8] sm:$0xff] %v553
        %682 = vst [vmem:[%s230 + $0x2f0] sm:$0xff] %v554
        %683 = vst [vmem:[%s230 + $0x2f8] sm:$0xff] %v555
        %684 = vst [vmem:[%s230 + $0x300] sm:$0xff] %v556
        %685 = vst [vmem:[%s230 + $0x308] sm:$0xff] %v557
        %686 = vst [vmem:[%s230 + $0x310] sm:$0xff] %v558
        %687 = vst [vmem:[%s230 + $0x318] sm:$0xff] %v559
        %688 = vst [vmem:[%s230 + $0x320] sm:$0xff] %v560
        %689 = vst [vmem:[%s230 + $0x328] sm:$0xff] %v561
        %690 = vst [vmem:[%s230 + $0x330] sm:$0xff] %v562
        %691 = vst [vmem:[%s230 + $0x338] sm:$0xff] %v563
        %692 = vst [vmem:[%s230 + $0x340] sm:$0xff] %v564
        %693 = vst [vmem:[%s230 + $0x348] sm:$0xff] %v565
        %694 = vst [vmem:[%s230 + $0x350] sm:$0xff] %v566
        %695 = vst [vmem:[%s230 + $0x358] sm:$0xff] %v567
        %696 = vst [vmem:[%s230 + $0x360] sm:$0xff] %v568
        %697 = vst [vmem:[%s230 + $0x368] sm:$0xff] %v569
        %698 = vst [vmem:[%s230 + $0x370] sm:$0xff] %v570
        %699 = vst [vmem:[%s230 + $0x378] sm:$0xff] %v571
        %700 = vst [vmem:[%s230 + $0x380] sm:$0xff] %v572
        %701 = vst [vmem:[%s230 + $0x388] sm:$0xff] %v573
        %702 = vst [vmem:[%s230 + $0x390] sm:$0xff] %v574
        %703 = vst [vmem:[%s230 + $0x398] sm:$0xff] %v575
        %704 = vst [vmem:[%s230 + $0x3a0] sm:$0xff] %v576
        %705 = vst [vmem:[%s230 + $0x3a8] sm:$0xff] %v577
        %706 = vst [vmem:[%s230 + $0x3b0] sm:$0xff] %v578
        %707 = vst [vmem:[%s230 + $0x3b8] sm:$0xff] %v579
        %708 = vst [vmem:[%s230 + $0x3c0] sm:$0xff] %v580
        %709 = vst [vmem:[%s230 + $0x3c8] sm:$0xff] %v581
        %710 = vst [vmem:[%s230 + $0x3d0] sm:$0xff] %v582
        %711 = vst [vmem:[%s230 + $0x3d8] sm:$0xff] %v583
        %712 = vst [vmem:[%s230 + $0x3e0] sm:$0xff] %v584
        %713 = vst [vmem:[%s230 + $0x3e8] sm:$0xff] %v585
        %714 = vst [vmem:[%s230 + $0x3f0] sm:$0xff] %v586
        %715 = vst [vmem:[%s230 + $0x3f8] sm:$0xff] %v587
        %s716 = sand.u32 %s98, 1
        %s717 = scalar_lea.sflag [#allocation4], %s716
        %s718 = sand.u32 %s98, 1
        %s719 = smul.addr %s718, 1024
        %s720 = scalar_lea.vmem [#allocation7], %s719
        // Predicated region
        $region37: #{tpu_custom_call.1} parent=27 // pred_check
          %p721 = pneg %p108
        $region38: #{tpu_custom_call.1} parent=27 // pred_check_branch
          %723 = sbr.rel (%p721) target = $region40
        $region39: #{tpu_custom_call.1} parent=27 // pred_region
          %s724 = smul.u32 8, %s27
          %s725 = smul.u32 16, %s26
          %s726 = ssub.s32 98, %s725
          %p727 = scmp.lt.s32.totalorder %s726, 16
          %s728 = scalar_select %p727, %s726, 16
          %s729 = smul.u32 1024, %s728
          %s731 = ssub.s32 16384, %s729
          %732 = vsyncadd %s717, %s731
          %p733 = scmp.ne.s32.totalorder 0, %s729
          %s734 = smul.addr %s724, 98
          %s735 = sadd.s32 %s725, %s734
          %s736 = smul.addr %s735, 128
          %s737 = scalar_lea.hbm %s2, %s736
          %s738 = smul.u32 %s728, 8
          %s739 = smul.u32 %s738, 8
          %s740 = sshll.u32 %s720, 4
          %s741 = int_to_ptr.vmem [resolvable:$true] %s740
          %s742 = sshll.u32 %s739, 4
          %746 = dma.vmem_to_hbm [thread:$0]  (%p733), %s741, %s742, %s737, %s717, 2048, 12544, %s738
        $region40: #{tpu_custom_call.1} parent=27 // pred_fallthru
          _
      $region28: #{tpu_custom_call.1} parent=5 // pred_fallthru
        _
      %p747 = scmp.le.s32.totalorder 2, %s17
      // Predicated region
      $region41: #{tpu_custom_call.1} parent=5 // pred_check
        %p748 = pneg %p747
      $region42: #{tpu_custom_call.1} parent=5 // pred_check_branch
        %750 = sbr.rel (%p748) target = $region44
      $region43: #{tpu_custom_call.1} parent=5 // pred_region
        %s751 = ssub.s32 %s17, 2
        // Predicated region
        $region45: #{tpu_custom_call.1} parent=43 // pred_check
          %p752 = pneg %p114
        $region46: #{tpu_custom_call.1} parent=43 // pred_check_branch
          %754 = sbr.rel (%p752) target = $region48
        $region47: #{tpu_custom_call.1} parent=43 // pred_region
          %s755 = sand.u32 %s99, 1
          %s756 = scalar_lea.sflag [#allocation4], %s755
          %s757 = sand.u32 %s99, 1
          %s758 = smul.addr %s757, 1024
          %s759 = scalar_lea.vmem [#allocation7], %s758
          %760 = dma.done %s756, 16384
        $region48: #{tpu_custom_call.1} parent=43 // pred_fallthru
          _
      $region44: #{tpu_custom_call.1} parent=5 // pred_fallthru
        _
    $region6: #{tpu_custom_call.1} parent=1 // loop_footer
      %s21 = sadd.s32 1, %s17
    $region7: #{tpu_custom_call.1} parent=1 // loop_footer_branch
      %16 = sbr.rel target = $region3
    $region8: #{tpu_custom_call.1} parent=1 // loop_exit
      _
    %761 = vsyncpa [#allocation3], 1
    %s762 = scalar_lea.sflag [#allocation3], 1
    %763 = vsyncpa %s762, 1
    %764 = vsyncpa [#allocation6], 1
    %s765 = scalar_lea.sflag [#allocation6], 1
    %766 = vsyncpa %s765, 1
    %767 = vsyncpa [#allocation4], 1
    %s768 = scalar_lea.sflag [#allocation4], 1
    %769 = vsyncpa %s768, 1

</llo_original>
